<compile_context>
chip_gen: v7x
topology: tpu7x:2x2x1
jax: 0.10.0
libtpu: 0.0.40
codegen_flags: <defaults>
</compile_context>

<pallas_src>
import jax
import jax.numpy as jnp
from jax.experimental import pallas as pl
from jax.experimental.pallas import tpu as pltpu


def _round_up(x, m):
    return (x + m - 1) // m * m


def _pick_tile_m(M, *, max_tile=512, min_steps=8):
    """Largest row tile (multiple of 8, capped) that keeps >= min_steps grid steps."""
    tile = _round_up(-(-M // min_steps), 8)      # ceil(M/min_steps) -> mult of 8
    return max(8, min(max_tile, tile))


def _conv_matmul_kernel(p_ref, w_ref, b_ref, o_ref):
    # p_ref: (TM, K)     im2col patch tile (K = 9*Cin, unpadded)
    # w_ref: (K, Cout)   fused 3x3 weights (resident, unpadded)
    # b_ref: (1, Cout)   bias
    # o_ref: (TM, Cout)  output tile (Cout = full dim, no zero padding)
    acc = jnp.dot(p_ref[...], w_ref[...], preferred_element_type=jnp.float32)
    o_ref[...] = (acc + b_ref[...]).astype(o_ref.dtype)


def ada_channel_conv_forward(x_nchw, weight, bias):
    """3x3, stride-1, pad-1 conv with bias.

    x_nchw: (N, C, H, W); weight: (3, 3, C, Cout); bias: (Cout,).
    Returns (N, Cout, H, W), matching PyTorch Conv2d output layout.
    """
    N, C, H, W = x_nchw.shape
    Cout = weight.shape[-1]
    K = 9 * C
    M = N * H * W

    # ---- wrapper-side im2col: one fused matmul instead of 9 tiny ones ----
    x_nhwc = jnp.transpose(x_nchw, (0, 2, 3, 1))               # (N,H,W,C)
    x_pad = jnp.pad(x_nhwc, ((0, 0), (1, 1), (1, 1), (0, 0)))  # halo pad=1
    # Patch channel order = ((kh*3 + kw)*C + cin)  -> matches weight.reshape.
    patches = jnp.concatenate(
        [x_pad[:, kh:kh + H, kw:kw + W, :]
         for kh in range(3) for kw in range(3)],
        axis=-1)                                               # (N,H,W,9C)
    patches = patches.reshape(M, K)                            # NO K padding

    tile_m = _pick_tile_m(M)
    Mp = _round_up(M, tile_m)
    if Mp != M:
        patches = jnp.pad(patches, ((0, Mp - M), (0, 0)))

    # Fused weight (3,3,C,Cout) -> (9C, Cout); bias -> (1, Cout).  No padding.
    w2d = weight.reshape(K, Cout)
    b2d = bias.reshape(1, Cout)

    cost = pl.CostEstimate(
        flops=2 * Mp * K * Cout,
        transcendentals=0,
        bytes_accessed=(Mp * K + K * Cout + Cout + Mp * Cout) * 4,
    )

    out = pl.pallas_call(
        _conv_matmul_kernel,
        out_shape=jax.ShapeDtypeStruct((Mp, Cout), x_nchw.dtype),
        grid_spec=pltpu.PrefetchScalarGridSpec(
            num_scalar_prefetch=0,
            grid=(Mp // tile_m,),
            in_specs=[
                pl.BlockSpec((tile_m, K), lambda m: (m, 0)),
                pl.BlockSpec((K, Cout), lambda m: (0, 0)),
                pl.BlockSpec((1, Cout), lambda m: (0, 0)),
            ],
            out_specs=pl.BlockSpec((tile_m, Cout), lambda m: (m, 0)),
        ),
        compiler_params=pltpu.CompilerParams(
            dimension_semantics=("parallel",),
            vmem_limit_bytes=32 * 1024 * 1024),
        cost_estimate=cost,
    )(patches, w2d, b2d)

    # Strip row padding, back to NCHW to match PyTorch output layout.
    out = out[:M].reshape(N, H, W, Cout)
    return jnp.transpose(out, (0, 3, 1, 2))


def _reference_conv(x_nchw, weight, bias):
    # Pure-JAX reference: lax conv in NCHW with OIHW weights.
    w_oihw = jnp.transpose(weight, (3, 2, 0, 1))  # (Cout, Cin, 3, 3)
    out = jax.lax.conv_general_dilated(
        x_nchw, w_oihw, window_strides=(1, 1), padding=((1, 1), (1, 1)),
        dimension_numbers=("NCHW", "OIHW", "NCHW"))
    return out + bias[None, :, None, None]


if __name__ == "__main__":
    key = jax.random.PRNGKey(0)
    kx, kw, kb = jax.random.split(key, 3)

    N, C, H, W = 2, 4, 16, 16
    Cout = 64

    x = jax.random.normal(kx, (N, C, H, W), dtype=jnp.float32)
    # Deterministic parameter init (Conv2d-style uniform bound 1/sqrt(fan_in));
    # the PyTorch module re-creates the Conv2d (random params) on every call.
    fan_in = C * 3 * 3
    bound = 1.0 / (fan_in ** 0.5)
    weight = jax.random.uniform(kw, (3, 3, C, Cout), jnp.float32, -bound, bound)
    bias = jax.random.uniform(kb, (Cout,), jnp.float32, -bound, bound)

    fwd = jax.jit(ada_channel_conv_forward)
    out = jax.block_until_ready(fwd(x, weight, bias))

    ref = _reference_conv(x, weight, bias)
    assert out.shape == (N, Cout, H, W), out.shape
    assert jnp.allclose(out, ref, atol=1e-4, rtol=1e-4), \
        float(jnp.max(jnp.abs(out - ref)))

    print("KERNEL_OK")
</pallas_src>

<mosaic_0001>
module attributes {stable_mosaic.version = 11 : i64} {
  func.func @_conv_matmul_kernel(%arg0: i32, %arg1: memref<64x36xf32, #tpu.memory_space<vmem>>, %arg2: memref<36x64xf32, #tpu.memory_space<vmem>>, %arg3: memref<1x64xf32, #tpu.memory_space<vmem>>, %arg4: memref<64x64xf32, #tpu.memory_space<vmem>>) attributes {dimension_semantics = [#tpu.dimension_semantics<parallel>], iteration_bounds = array<i64: 8>, scalar_prefetch = 0 : i64, scratch_operands = 0 : i64, tpu.core_type = #tpu.core_type<tc>, window_params = [{transform_indices = @transform_0, window_bounds = array<i64: 64, 36>}, {pipeline_mode = #tpu.pipeline_mode<synchronous>, transform_indices = @transform_1, window_bounds = array<i64: 36, 64>}, {pipeline_mode = #tpu.pipeline_mode<synchronous>, transform_indices = @transform_2, window_bounds = array<i64: 1, 64>}, {transform_indices = @transform_3, window_bounds = array<i64: 64, 64>}]} {
    %c0 = arith.constant 0 : index
    %c0_0 = arith.constant 0 : index
    %0 = vector.load %arg1[%c0, %c0_0] : memref<64x36xf32, #tpu.memory_space<vmem>>, vector<64x36xf32>
    %c0_1 = arith.constant 0 : index
    %c0_2 = arith.constant 0 : index
    %1 = vector.load %arg2[%c0_1, %c0_2] : memref<36x64xf32, #tpu.memory_space<vmem>>, vector<36x64xf32>
    %cst = arith.constant dense<0.000000e+00> : vector<64x64xf32>
    %2 = tpu.matmul %0, %1, %cst {dimension_numbers = #tpu.dot_dimension_numbers<[1], [0], [0], [1], [0, 0, 1, 1], [], []>} : vector<64x36xf32>, vector<36x64xf32>, vector<64x64xf32> -> vector<64x64xf32>
    %c0_3 = arith.constant 0 : index
    %c0_4 = arith.constant 0 : index
    %3 = vector.load %arg3[%c0_3, %c0_4] : memref<1x64xf32, #tpu.memory_space<vmem>>, vector<1x64xf32>
    %4 = vector.broadcast %3 : vector<1x64xf32> to vector<64x64xf32>
    %5 = arith.addf %2, %4 : vector<64x64xf32>
    %c0_5 = arith.constant 0 : index
    %c0_6 = arith.constant 0 : index
    %6 = vector.load %arg4[%c0_5, %c0_6] : memref<64x64xf32, #tpu.memory_space<vmem>>, vector<64x64xf32>
    tpu.vector_store %arg4[%c0_5, %c0_6], %5 {strides = array<i32>} : memref<64x64xf32, #tpu.memory_space<vmem>>, vector<64x64xf32>,
    return
  }
  func.func @transform_0(%arg0: i32) -> (i32, i32) {
    %c0_i32 = arith.constant 0 : i32
    %c0_i32_0 = arith.constant 0 : i32
    return %arg0, %c0_i32 : i32, i32
  }
  func.func @transform_1(%arg0: i32) -> (i32, i32) {
    %c0_i32 = arith.constant 0 : i32
    %c0_i32_0 = arith.constant 0 : i32
    %c0_i32_1 = arith.constant 0 : i32
    return %c0_i32, %c0_i32_0 : i32, i32
  }
  func.func @transform_2(%arg0: i32) -> (i32, i32) {
    %c0_i32 = arith.constant 0 : i32
    %c0_i32_0 = arith.constant 0 : i32
    %c0_i32_1 = arith.constant 0 : i32
    return %c0_i32, %c0_i32_0 : i32, i32
  }
  func.func @transform_3(%arg0: i32) -> (i32, i32) {
    %c0_i32 = arith.constant 0 : i32
    %c0_i32_0 = arith.constant 0 : i32
    return %arg0, %c0_i32 : i32, i32
  }
}

</mosaic_0001>

<llo_original>
// kernel: ada_channel_conv_forward.1
$region0: #{ada_channel_conv_forward.1}
  #allocation0 [shape = 'u32[]', space=smem, size = 0x4, offset = 0x4, fixed_abs, tag = 'smem constant byte address 0x4 - core index']
  #allocation1 [shape = 'u32[144,128]{1,0:T(1,128)}', space=vmem, size = 0x12000, scoped, tag = 'internal scratch']
  %s0 = inlined_call_operand.vmem [shape: f32[512,36], index: 0, kind: input, shape index: {}]
  %s1 = inlined_call_operand.vmem [shape: f32[36,64], index: 1, kind: input, shape index: {}]
  %s2 = inlined_call_operand.vmem [shape: f32[1,64], index: 2, kind: input, shape index: {}]
  %s3 = inlined_call_operand.hbm [shape: f32[512,64], index: 3, kind: output, shape index: {}]
  %s4 = sld [smem:[#allocation0]]
  $region45: #{ada_channel_conv_forward.1} parent=0
    _
  %s6 = ssub.s32 1, %s4
  %s7 = scalar_select 0, %s6, %s4
  $region1: #{ada_channel_conv_forward.1} parent=0
    #allocation2 [shape = 'u8[65536]{0}', space=vmem, size = 0x10000, scoped, tag = 'output window, operand 0']
    #allocation3 [shape = 's32[2]{0}', space=sflag, size = 0x8, scoped, tag = 'scoped memory for ada_channel_conv_forward.1']
    %8 = vsyncpa [#allocation3], 0
    %s9 = scalar_lea.sflag [#allocation3], 1
    %10 = vsyncpa %s9, 0
    loop: start=0, step=1, limit=10
    $region2: #{ada_channel_conv_forward.1} parent=1 // loop_pre_header
      _
    $region3: #{ada_channel_conv_forward.1} parent=1 // loop_header
      %s12 = sphi 0, %s16
      %p13 = scmp.ge.s32.totalorder %s12, 10
      %s22 = sphi 0, %s24
      %s25 = sphi 0, %s22
      %s26 = sphi 0, %s25
      %s42 = sphi 0, %s26
      %s46 = sphi 0, %s46
      %s48 = sphi 0, %s46
      %s49 = sphi 0, %s48
      %s63 = sphi 0, %s49
      %s67 = sphi 0, %s67
      %s69 = sphi 0, %s67
      %s70 = sphi 0, %s69
      %s84 = sphi 0, %s70
      %s90 = sphi 0, %s92
      %s93 = sphi 0, %s90
      %s94 = sphi 0, %s93
      %s110 = sphi 0, %s94
    $region4: #{ada_channel_conv_forward.1} parent=1 // loop_header_branch
      %15 = sbr.rel (%p13) target = $region8
    $region5: #{ada_channel_conv_forward.1} parent=1 // loop_body
      %s17 = ssub.s32 %s12, 1
      %s18 = ssub.s32 %s12, 2
      %s19 = sadd.s32 %s12, 1
      %s20 = ssub.s32 %s12, %s19
      %p21 = scmp.eq.s32.totalorder %s20, 0
      %s23 = sadd.s32 %s22, 1
      %s24 = scalar_select %p21, %s22, %s23
      %p27 = pneg %p21
      %p28 = scmp.eq.s32.totalorder %s12, 7
      %p29 = por %p27, %p28
      %p30 = scmp.ne.s32.totalorder %s22, %s25
      %p31 = scmp.eq.s32.totalorder %s12, 0
      %p32 = por %p30, %p31
      %p33 = scmp.ne.s32.totalorder %s22, %s25
      %p34 = scmp.eq.s32.totalorder %s17, 7
      %p35 = por %p33, %p34
      %p36 = scmp.ne.s32.totalorder %s25, %s26
      %p37 = scmp.eq.s32.totalorder %s17, 0
      %p38 = por %p36, %p37
      %p39 = scmp.ne.s32.totalorder %s25, %s26
      %p40 = scmp.eq.s32.totalorder %s18, 7
      %p41 = por %p39, %p40
      %p43 = scmp.ne.s32.totalorder %s26, %s42
      %p44 = scmp.eq.s32.totalorder %s18, 0
      %p45 = por %p43, %p44
      %s47 = sadd.s32 %s46, 1
      %p50 = scmp.eq.s32.totalorder %s12, 7
      %p51 = scmp.ne.s32.totalorder %s46, %s48
      %p52 = scmp.eq.s32.totalorder %s12, 0
      %p53 = por %p51, %p52
      %p54 = scmp.ne.s32.totalorder %s46, %s48
      %p55 = scmp.eq.s32.totalorder %s17, 7
      %p56 = por %p54, %p55
      %p57 = scmp.ne.s32.totalorder %s48, %s49
      %p58 = scmp.eq.s32.totalorder %s17, 0
      %p59 = por %p57, %p58
      %p60 = scmp.ne.s32.totalorder %s48, %s49
      %p61 = scmp.eq.s32.totalorder %s18, 7
      %p62 = por %p60, %p61
      %p64 = scmp.ne.s32.totalorder %s49, %s63
      %p65 = scmp.eq.s32.totalorder %s18, 0
      %p66 = por %p64, %p65
      %s68 = sadd.s32 %s67, 1
      %p71 = scmp.eq.s32.totalorder %s12, 7
      %p72 = scmp.ne.s32.totalorder %s67, %s69
      %p73 = scmp.eq.s32.totalorder %s12, 0
      %p74 = por %p72, %p73
      %p75 = scmp.ne.s32.totalorder %s67, %s69
      %p76 = scmp.eq.s32.totalorder %s17, 7
      %p77 = por %p75, %p76
      %p78 = scmp.ne.s32.totalorder %s69, %s70
      %p79 = scmp.eq.s32.totalorder %s17, 0
      %p80 = por %p78, %p79
      %p81 = scmp.ne.s32.totalorder %s69, %s70
      %p82 = scmp.eq.s32.totalorder %s18, 7
      %p83 = por %p81, %p82
      %p85 = scmp.ne.s32.totalorder %s70, %s84
      %p86 = scmp.eq.s32.totalorder %s18, 0
      %p87 = por %p85, %p86
      %s88 = ssub.s32 %s12, %s19
      %p89 = scmp.eq.s32.totalorder %s88, 0
      %s91 = sadd.s32 %s90, 1
      %s92 = scalar_select %p89, %s90, %s91
      %p95 = pneg %p89
      %p96 = scmp.eq.s32.totalorder %s12, 7
      %p97 = por %p95, %p96
      %p98 = scmp.ne.s32.totalorder %s90, %s93
      %p99 = scmp.eq.s32.totalorder %s12, 0
      %p100 = por %p98, %p99
      %p101 = scmp.ne.s32.totalorder %s90, %s93
      %p102 = scmp.eq.s32.totalorder %s17, 7
      %p103 = por %p101, %p102
      %p104 = scmp.ne.s32.totalorder %s93, %s94
      %p105 = scmp.eq.s32.totalorder %s17, 0
      %p106 = por %p104, %p105
      %p107 = scmp.ne.s32.totalorder %s93, %s94
      %p108 = scmp.eq.s32.totalorder %s18, 7
      %p109 = por %p107, %p108
      %p111 = scmp.ne.s32.totalorder %s94, %s110
      %p112 = scmp.eq.s32.totalorder %s18, 0
      %p113 = por %p111, %p112
      %p114 = scmp.le.s32.totalorder 1, %s12
      %p115 = scmp.lt.s32.totalorder %s12, 9
      %p116 = pnand %p114, %p115
      %p117 = pneg %p116
      // Predicated region
      $region9: #{ada_channel_conv_forward.1} parent=5 // pred_check
        _
      $region10: #{ada_channel_conv_forward.1} parent=5 // pred_check_branch
        %119 = sbr.rel (%p116) target = $region12
      $region11: #{ada_channel_conv_forward.1} parent=5 // pred_region
        %s120 = ssub.s32 %s12, 1
        // Predicated region
        $region13: #{ada_channel_conv_forward.1} parent=11 // pred_check
          %p121 = pneg %p59
        $region14: #{ada_channel_conv_forward.1} parent=11 // pred_check_branch
          %123 = sbr.rel (%p121) target = $region16
        $region15: #{ada_channel_conv_forward.1} parent=11 // pred_region
          _
        $region16: #{ada_channel_conv_forward.1} parent=11 // pred_fallthru
          _
        // Predicated region
        $region17: #{ada_channel_conv_forward.1} parent=11 // pred_check
          %p124 = pneg %p80
        $region18: #{ada_channel_conv_forward.1} parent=11 // pred_check_branch
          %126 = sbr.rel (%p124) target = $region20
        $region19: #{ada_channel_conv_forward.1} parent=11 // pred_region
          _
        $region20: #{ada_channel_conv_forward.1} parent=11 // pred_fallthru
          _
      $region12: #{ada_channel_conv_forward.1} parent=5 // pred_fallthru
        _
      %p127 = scmp.lt.s32.totalorder %s12, 8
      // Predicated region
      $region21: #{ada_channel_conv_forward.1} parent=5 // pred_check
        %p128 = pneg %p127
      $region22: #{ada_channel_conv_forward.1} parent=5 // pred_check_branch
        %130 = sbr.rel (%p128) target = $region24
      $region23: #{ada_channel_conv_forward.1} parent=5 // pred_region
        // Predicated region
        $region25: #{ada_channel_conv_forward.1} parent=23 // pred_check
          %p131 = pneg %p32
        $region26: #{ada_channel_conv_forward.1} parent=23 // pred_check_branch
          %133 = sbr.rel (%p131) target = $region28
        $region27: #{ada_channel_conv_forward.1} parent=23 // pred_region
          %s134 = smul.u32 8, %s12
          %p135 = scmp.lt.s32.totalorder %s134, 63
          %s136 = scalar_select %p135, %s134, 63
          %s137 = smul.addr %s136, 8
          %s138 = scalar_lea.vmem %s0, %s137
          %s139 = smul.u32 8, %s12
        $region28: #{ada_channel_conv_forward.1} parent=23 // pred_fallthru
          _
      $region24: #{ada_channel_conv_forward.1} parent=5 // pred_fallthru
        _
      %p140 = scmp.le.s32.totalorder 1, %s12
      %p141 = scmp.lt.s32.totalorder %s12, 9
      %p142 = pnand %p140, %p141
      %p143 = pneg %p142
      // Predicated region
      $region29: #{ada_channel_conv_forward.1} parent=5 // pred_check
        _
      $region30: #{ada_channel_conv_forward.1} parent=5 // pred_check_branch
        %145 = sbr.rel (%p142) target = $region32
      $region31: #{ada_channel_conv_forward.1} parent=5 // pred_region
        %s146 = ssub.s32 %s12, 1
        %s147 = smul.u32 8, %s17
        %p148 = scmp.lt.s32.totalorder %s147, 63
        %s149 = scalar_select %p148, %s147, 63
        %s150 = smul.addr %s149, 8
        %s151 = scalar_lea.vmem %s0, %s150
        %p152 = pneg %p38
        %p153 = pneg %p35
        %p154 = pneg %p59
        %p155 = pneg %p56
        %p156 = pneg %p80
        %p157 = pneg %p77
        %p158 = pneg %p106
        %p159 = pneg %p103
        %s160 = sand.u32 %s93, 1
        %s161 = scalar_lea.sflag [#allocation3], %s160
        %s162 = sand.u32 %s93, 1
        %s163 = smul.addr %s162, 64
        %s164 = scalar_lea.vmem [#allocation2], %s163
        %s165 = smul.u32 8, %s17
        %p166 = scmp.lt.s32.totalorder %s165, 63
        %s167 = scalar_select %p166, %s165, 63
        %s168 = smul.addr %s167, 8
        %s169 = scalar_lea.vmem %s0, %s168
        %s170 = smul.u32 8, %s17
        %s171 = smul.u32 8, %s17
        %v172 = vld [vmem:[%s169] sm:$0xff]
        %v173 = vld [vmem:[%s169 + $0x8] sm:$0xff]
        %v174 = vld [vmem:[%s169 + $0x10] sm:$0xff]
        %v175 = vld [vmem:[%s169 + $0x18] sm:$0xff]
        %v176 = vld [vmem:[%s169 + $0x20] sm:$0xff]
        %v177 = vld [vmem:[%s169 + $0x28] sm:$0xff]
        %v178 = vld [vmem:[%s169 + $0x30] sm:$0xff]
        %v179 = vld [vmem:[%s169 + $0x38] sm:$0xff]
        %v180 = vld [vmem:[%s1] sm:$0xff]
        %v181 = vld [vmem:[%s1 + $0x8] sm:$0xff]
        %v182 = vld [vmem:[%s1 + $0x10] sm:$0xff]
        %v183 = vld [vmem:[%s1 + $0x18] sm:$0xff]
        %v184 = vld [vmem:[%s1 + $0x20] sm:$0xf]
        %v185 = vld [vmem:[%s2] sm:$0x1]
        %v187 = vlaneseq
        %v188 = vshrl.u32 %v187, 7
        %v189 = vsub.s32 0, %v188
        %v190 = vrot.slane %v185, %v189
        %vm192 = vcmask 293888
        %v194 = vsel %vm192, %v172, 0
        %v197 = vsel %vm192, %v173, 0
        %v200 = vsel %vm192, %v174, 0
        %v203 = vsel %vm192, %v175, 0
        %v206 = vsel %vm192, %v176, 0
        %v209 = vsel %vm192, %v177, 0
        %v212 = vsel %vm192, %v178, 0
        %v215 = vsel %vm192, %v179, 0
        %vm217 = vcmask 1043456
        %v219 = vsel %vm217, %v184, 0
        %221 = vmatprep.subr.mxu0 0.0
        %222 = vmatpush1.msra.mxu0 %v180
        %223 = vmatprep.subr.mxu0 0.0
        %224 = vmatpush1.msra.mxu0 %v181
        %225 = vmatprep.subr.mxu0 0.0
        %226 = vmatpush1.msra.mxu0 %v182
        %227 = vmatprep.subr.mxu0 0.0
        %228 = vmatpush1.msra.mxu0 %v183
        %229 = vmatprep.subr.mxu0 0.0
        %230 = vmatpush1.msra.mxu0 %v219
        %231 = vmatprep.subr.mxu0 0.0
        %232 = vmatpush1.msra.mxu0 0.0
        %233 = vmatprep.subr.mxu0 0.0
        %234 = vmatpush1.msra.mxu0 0.0
        %235 = vmatprep.subr.mxu0 0.0
        %236 = vmatpush1.msra.mxu0 0.0
        %237 = vmatprep.subr.mxu0 0.0
        %238 = vmatpush1.msra.mxu0 0.0
        %239 = vmatprep.subr.mxu0 0.0
        %240 = vmatpush1.msra.mxu0 0.0
        %241 = vmatprep.subr.mxu0 0.0
        %242 = vmatpush1.msra.mxu0 0.0
        %243 = vmatprep.subr.mxu0 0.0
        %244 = vmatpush1.msra.mxu0 0.0
        %245 = vmatprep.subr.mxu0 0.0
        %246 = vmatpush1.msra.mxu0 0.0
        %247 = vmatprep.subr.mxu0 0.0
        %248 = vmatpush1.msra.mxu0 0.0
        %249 = vmatprep.subr.mxu0 0.0
        %250 = vmatpush1.msra.mxu0 0.0
        %251 = vmatprep.subr.mxu0 0.0
        %252 = vmatpush1.msra.mxu0 0.0
        %253 = vmatprep.subr.mxu0 0.0
        %254 = vmatpush1.msra.mxu0 0.0
        %255 = vmatprep.subr.mxu0 0.0
        %256 = vmatpush1.msra.mxu0 0.0
        %257 = vmatprep.subr.mxu0 0.0
        %258 = vmatpush1.msra.mxu0 0.0
        %259 = vmatprep.subr.mxu0 0.0
        %260 = vmatpush1.msra.mxu0 0.0
        %261 = vmatprep.subr.mxu0 0.0
        %262 = vmatpush1.msra.mxu0 0.0
        %263 = vmatprep.subr.mxu0 0.0
        %264 = vmatpush1.msra.mxu0 0.0
        %265 = vmatprep.subr.mxu0 0.0
        %266 = vmatpush1.msra.mxu0 0.0
        %267 = vmatprep.subr.mxu0 0.0
        %268 = vmatpush1.msra.mxu0 0.0
        %269 = vmatprep.subr.mxu0 0.0
        %270 = vmatpush1.msra.mxu0 0.0
        %271 = vmatprep.subr.mxu0 0.0
        %272 = vmatpush1.msra.mxu0 0.0
        %273 = vmatprep.subr.mxu0 0.0
        %274 = vmatpush1.msra.mxu0 0.0
        %275 = vmatprep.subr.mxu0 0.0
        %276 = vmatpush1.msra.mxu0 0.0
        %277 = vmatprep.subr.mxu0 0.0
        %278 = vmatpush1.msra.mxu0 0.0
        %279 = vmatprep.subr.mxu0 0.0
        %280 = vmatpush1.msra.mxu0 0.0
        %281 = vmatprep.subr.mxu0 0.0
        %282 = vmatpush1.msra.mxu0 0.0
        %283 = vmatprep.subr.mxu0 0.0
        %284 = vmatpush1.msra.mxu0 0.0
        %285 = vmatprep.mubr.f32.mxu0 0.0
        %286 = vmatmul.mubr.f32.gmra.mrb[0].mxu0 %v194
        %v287 = vpop.f32.mrb[0].mxu0
        %v288 = vadd.f32 %v190, %v287
        %v289 = vpop.f32.mrb[0].mxu0
        %290 = vmatprep.mubr.f32.mxu0 0.0
        %291 = vmatmul.mubr.f32.gmra.mrb[0].mxu0 %v197
        %v292 = vpop.f32.mrb[0].mxu0
        %v293 = vadd.f32 %v190, %v292
        %v294 = vpop.f32.mrb[0].mxu0
        %295 = vmatprep.mubr.f32.mxu0 0.0
        %296 = vmatmul.mubr.f32.gmra.mrb[0].mxu0 %v200
        %v297 = vpop.f32.mrb[0].mxu0
        %v298 = vadd.f32 %v190, %v297
        %v299 = vpop.f32.mrb[0].mxu0
        %300 = vmatprep.mubr.f32.mxu0 0.0
        %301 = vmatmul.mubr.f32.gmra.mrb[0].mxu0 %v203
        %v302 = vpop.f32.mrb[0].mxu0
        %v303 = vadd.f32 %v190, %v302
        %v304 = vpop.f32.mrb[0].mxu0
        %305 = vmatprep.mubr.f32.mxu0 0.0
        %306 = vmatmul.mubr.f32.gmra.mrb[0].mxu0 %v206
        %v307 = vpop.f32.mrb[0].mxu0
        %v308 = vadd.f32 %v190, %v307
        %v309 = vpop.f32.mrb[0].mxu0
        %310 = vmatprep.mubr.f32.mxu0 0.0
        %311 = vmatmul.mubr.f32.gmra.mrb[0].mxu0 %v209
        %v312 = vpop.f32.mrb[0].mxu0
        %v313 = vadd.f32 %v190, %v312
        %v314 = vpop.f32.mrb[0].mxu0
        %315 = vmatprep.mubr.f32.mxu0 0.0
        %316 = vmatmul.mubr.f32.gmra.mrb[0].mxu0 %v212
        %v317 = vpop.f32.mrb[0].mxu0
        %v318 = vadd.f32 %v190, %v317
        %v319 = vpop.f32.mrb[0].mxu0
        %320 = vmatprep.mubr.f32.mxu0 0.0
        %321 = vmatmul.mubr.f32.gmra.mrb[0].mxu0 %v215
        %v322 = vpop.f32.mrb[0].mxu0
        %v323 = vadd.f32 %v190, %v322
        %v324 = vpop.f32.mrb[0].mxu0
        %325 = vdwg.mxu0
        %vm326 = vcmask 523264
        %327 = vst.msk [vmem:[%s164] sm:$0xff] %vm326, %v288
        %328 = vst.msk [vmem:[%s164 + $0x8] sm:$0xff] %vm326, %v293
        %329 = vst.msk [vmem:[%s164 + $0x10] sm:$0xff] %vm326, %v298
        %330 = vst.msk [vmem:[%s164 + $0x18] sm:$0xff] %vm326, %v303
        %331 = vst.msk [vmem:[%s164 + $0x20] sm:$0xff] %vm326, %v308
        %332 = vst.msk [vmem:[%s164 + $0x28] sm:$0xff] %vm326, %v313
        %333 = vst.msk [vmem:[%s164 + $0x30] sm:$0xff] %vm326, %v318
        %334 = vst.msk [vmem:[%s164 + $0x38] sm:$0xff] %vm326, %v323
        %s335 = sand.u32 %s93, 1
        %s336 = scalar_lea.sflag [#allocation3], %s335
        %s337 = sand.u32 %s93, 1
        %s338 = smul.addr %s337, 64
        %s339 = scalar_lea.vmem [#allocation2], %s338
        // Predicated region
        $region33: #{ada_channel_conv_forward.1} parent=31 // pred_check
          %p340 = pneg %p103
        $region34: #{ada_channel_conv_forward.1} parent=31 // pred_check_branch
          %342 = sbr.rel (%p340) target = $region36
        $region35: #{ada_channel_conv_forward.1} parent=31 // pred_region
          %s343 = smul.u32 8, %s17
          %s345 = ssub.s32 1024, 1024
          %346 = vsyncadd %s336, %s345
          %s347 = smul.addr %s343, 128
          %s348 = scalar_lea.hbm %s3, %s347
          %s349 = sshll.u32 %s339, 4
          %s350 = int_to_ptr.vmem [resolvable:$true] %s349
          %355 = dma.vmem_to_hbm [thread:$0]  %s350, 1024, %s348, %s336, 128, 128, 8
        $region36: #{ada_channel_conv_forward.1} parent=31 // pred_fallthru
          _
      $region32: #{ada_channel_conv_forward.1} parent=5 // pred_fallthru
        _
      %p356 = scmp.le.s32.totalorder 2, %s12
      // Predicated region
      $region37: #{ada_channel_conv_forward.1} parent=5 // pred_check
        %p357 = pneg %p356
      $region38: #{ada_channel_conv_forward.1} parent=5 // pred_check_branch
        %359 = sbr.rel (%p357) target = $region40
      $region39: #{ada_channel_conv_forward.1} parent=5 // pred_region
        %s360 = ssub.s32 %s12, 2
        // Predicated region
        $region41: #{ada_channel_conv_forward.1} parent=39 // pred_check
          %p361 = pneg %p109
        $region42: #{ada_channel_conv_forward.1} parent=39 // pred_check_branch
          %363 = sbr.rel (%p361) target = $region44
        $region43: #{ada_channel_conv_forward.1} parent=39 // pred_region
          %s364 = sand.u32 %s94, 1
          %s365 = scalar_lea.sflag [#allocation3], %s364
          %s366 = sand.u32 %s94, 1
          %s367 = smul.addr %s366, 64
          %s368 = scalar_lea.vmem [#allocation2], %s367
          %369 = dma.done %s365, 1024
        $region44: #{ada_channel_conv_forward.1} parent=39 // pred_fallthru
          _
      $region40: #{ada_channel_conv_forward.1} parent=5 // pred_fallthru
        _
    $region6: #{ada_channel_conv_forward.1} parent=1 // loop_footer
      %s16 = sadd.s32 1, %s12
    $region7: #{ada_channel_conv_forward.1} parent=1 // loop_footer_branch
      %11 = sbr.rel target = $region3
    $region8: #{ada_channel_conv_forward.1} parent=1 // loop_exit
      _
    %370 = vsyncpa [#allocation3], 1
    %s371 = scalar_lea.sflag [#allocation3], 1
    %372 = vsyncpa %s371, 1

</llo_original>
